<compile_context>
chip_gen: v5e
topology: v5e:2x2
jax: 0.10.0
libtpu: 0.0.40
codegen_flags: <defaults>
</compile_context>

<pallas_src>
import math

import jax
import jax.numpy as jnp
from jax import lax
from jax.experimental import pallas as pl
from jax.experimental.pallas import tpu as pltpu

N_KEYPOINTS = 25
N_ORIENTS = 8
IN_DIM = N_KEYPOINTS * 3   # 75
K_PAD = 128                # padded contraction dim (lane-aligned, MXU-friendly)
H1 = 64
H2 = 32
MAX_TILE_BATCH = 1024      # rows per grid step (fits v5e/v6e/v7x scoped VMEM)


def _round_up(n, m):
    return ((n + m - 1) // m) * m


def orientnet_kernel(x_ref, w1_ref, b1_ref, w2_ref, b2_ref, w3_ref, b3_ref,
                     out_ref):
    # x tile: (TB, 128) bf16; weights bf16; biases f32.
    x = x_ref[...]
    # feature: Linear(75->64) + ReLU  (bf16 MXU operands, f32 accumulate)
    h1 = jnp.dot(x, w1_ref[...], preferred_element_type=jnp.float32) + b1_ref[...]
    h1 = jnp.maximum(h1, 0.0)
    # feature: Linear(64->32) + ReLU
    h2 = jnp.dot(h1.astype(jnp.bfloat16), w2_ref[...],
                 preferred_element_type=jnp.float32) + b2_ref[...]
    h2 = jnp.maximum(h2, 0.0)
    # fc: Linear(32->8)
    out = jnp.dot(h2.astype(jnp.bfloat16), w3_ref[...],
                  preferred_element_type=jnp.float32) + b3_ref[...]
    out_ref[...] = out.astype(out_ref.dtype)


def orientnet_forward(x, params, *, tile_batch=MAX_TILE_BATCH):
    """x: (batch, 75) float32. Returns (batch, 8) float32."""
    w1, b1, w2, b2, w3, b3 = params
    batch = x.shape[0]

    # Batch tile: multiple of 16 (bf16 sublane packing), capped for VMEM.
    tb = min(tile_batch, _round_up(max(batch, 1), 16))
    batch_p = _round_up(batch, tb)
    grid = (batch_p // tb,)

    # Data prep (outside the kernel): pad K 75 -> 128, cast MXU operands to
    # bf16, pad batch to a multiple of the tile. Biases stay f32 (1, N).
    x_p = jnp.zeros((batch_p, K_PAD), jnp.bfloat16)
    x_p = x_p.at[:batch, :IN_DIM].set(x.astype(jnp.bfloat16))
    w1_p = jnp.zeros((K_PAD, H1), jnp.bfloat16)
    w1_p = w1_p.at[:IN_DIM, :].set(w1.astype(jnp.bfloat16))
    w2_b = w2.astype(jnp.bfloat16)
    w3_b = w3.astype(jnp.bfloat16)

    out = pl.pallas_call(
        orientnet_kernel,
        out_shape=jax.ShapeDtypeStruct((batch_p, N_ORIENTS), jnp.float32),
        grid=grid,
        in_specs=[
            # x: tiled over batch -> auto double-buffered / pipelined.
            pl.BlockSpec((tb, K_PAD), lambda i: (i, 0)),
            # weights & biases: constant block index -> resident in VMEM.
            pl.BlockSpec((K_PAD, H1), lambda i: (0, 0)),
            pl.BlockSpec((1, H1), lambda i: (0, 0)),
            pl.BlockSpec((H1, H2), lambda i: (0, 0)),
            pl.BlockSpec((1, H2), lambda i: (0, 0)),
            pl.BlockSpec((H2, N_ORIENTS), lambda i: (0, 0)),
            pl.BlockSpec((1, N_ORIENTS), lambda i: (0, 0)),
        ],
        out_specs=pl.BlockSpec((tb, N_ORIENTS), lambda i: (i, 0)),
        compiler_params=pltpu.CompilerParams(
            dimension_semantics=("parallel",)),
    )(x_p, w1_p, b1, w2_b, b2, w3_b, b3)
    return out[:batch]


def init_params(key):
    """Deterministic init matching nn.Linear's default U(-1/sqrt(fan_in), +)."""
    def linear(key, fan_in, fan_out):
        kw, kb = jax.random.split(key)
        bound = 1.0 / math.sqrt(fan_in)
        w = jax.random.uniform(kw, (fan_in, fan_out), jnp.float32, -bound, bound)
        b = jax.random.uniform(kb, (1, fan_out), jnp.float32, -bound, bound)
        return w, b

    k1, k2, k3 = jax.random.split(key, 3)
    w1, b1 = linear(k1, IN_DIM, H1)
    w2, b2 = linear(k2, H1, H2)
    w3, b3 = linear(k3, H2, N_ORIENTS)
    return w1, b1, w2, b2, w3, b3


def _dot(a, b):
    return jnp.dot(a, b, precision=lax.Precision.HIGHEST)


def reference_forward_f32(x, params):
    """Pure f32 reference = PyTorch module semantics."""
    w1, b1, w2, b2, w3, b3 = params
    h1 = jnp.maximum(_dot(x, w1) + b1, 0.0)
    h2 = jnp.maximum(_dot(h1, w2) + b2, 0.0)
    return _dot(h2, w3) + b3


def reference_forward_bf16(x, params):
    """Emulates the kernel's numerics: bf16 matmul operands, f32 accumulate/bias/ReLU."""
    w1, b1, w2, b2, w3, b3 = params
    f = lambda a: a.astype(jnp.bfloat16).astype(jnp.float32)
    h1 = jnp.maximum(_dot(f(x), f(w1)) + b1, 0.0)
    h2 = jnp.maximum(_dot(f(h1), f(w2)) + b2, 0.0)
    return _dot(f(h2), f(w3)) + b3


if __name__ == "__main__":
    key = jax.random.PRNGKey(0)
    kp, kx = jax.random.split(key)

    params = init_params(kp)
    batch = 8
    # flattened openpose keypoints: (batch, 25 * 3)
    x = jax.random.normal(kx, (batch, IN_DIM), dtype=jnp.float32)

    out = orientnet_forward(x, params)
    out = jax.block_until_ready(out)
    assert out.shape == (batch, N_ORIENTS)

    # Tight check vs a reference with identical numerics (bf16 operands, f32 acc).
    ref_bf16 = reference_forward_bf16(x, params)
    assert jnp.allclose(out, ref_bf16, atol=1e-3, rtol=1e-3), (
        float(jnp.max(jnp.abs(out - ref_bf16))))

    # Loose check vs the full-f32 module semantics (bf16 operand rounding only).
    ref_f32 = reference_forward_f32(x, params)
    assert jnp.allclose(out, ref_f32, atol=5e-2, rtol=5e-2), (
        float(jnp.max(jnp.abs(out - ref_f32))))

    print("KERNEL_OK")
</pallas_src>

<mosaic_0001>
module attributes {stable_mosaic.version = 11 : i64} {
  func.func @orientnet_kernel(%arg0: i32, %arg1: memref<16x128xbf16, #tpu.memory_space<vmem>>, %arg2: memref<128x64xbf16, #tpu.memory_space<vmem>>, %arg3: memref<1x64xf32, #tpu.memory_space<vmem>>, %arg4: memref<64x32xbf16, #tpu.memory_space<vmem>>, %arg5: memref<1x32xf32, #tpu.memory_space<vmem>>, %arg6: memref<32x8xbf16, #tpu.memory_space<vmem>>, %arg7: memref<1x8xf32, #tpu.memory_space<vmem>>, %arg8: memref<16x8xf32, #tpu.memory_space<vmem>>) attributes {dimension_semantics = [#tpu.dimension_semantics<parallel>], iteration_bounds = array<i64: 1>, scalar_prefetch = 0 : i64, scratch_operands = 0 : i64, tpu.core_type = #tpu.core_type<tc>, window_params = [{transform_indices = @transform_0, window_bounds = array<i64: 16, 128>}, {pipeline_mode = #tpu.pipeline_mode<synchronous>, transform_indices = @transform_1, window_bounds = array<i64: 128, 64>}, {pipeline_mode = #tpu.pipeline_mode<synchronous>, transform_indices = @transform_2, window_bounds = array<i64: 1, 64>}, {pipeline_mode = #tpu.pipeline_mode<synchronous>, transform_indices = @transform_3, window_bounds = array<i64: 64, 32>}, {pipeline_mode = #tpu.pipeline_mode<synchronous>, transform_indices = @transform_4, window_bounds = array<i64: 1, 32>}, {pipeline_mode = #tpu.pipeline_mode<synchronous>, transform_indices = @transform_5, window_bounds = array<i64: 32, 8>}, {pipeline_mode = #tpu.pipeline_mode<synchronous>, transform_indices = @transform_6, window_bounds = array<i64: 1, 8>}, {transform_indices = @transform_7, window_bounds = array<i64: 16, 8>}]} {
    %c0 = arith.constant 0 : index
    %c0_0 = arith.constant 0 : index
    %0 = vector.load %arg1[%c0, %c0_0] : memref<16x128xbf16, #tpu.memory_space<vmem>>, vector<16x128xbf16>
    %c0_1 = arith.constant 0 : index
    %c0_2 = arith.constant 0 : index
    %1 = vector.load %arg2[%c0_1, %c0_2] : memref<128x64xbf16, #tpu.memory_space<vmem>>, vector<128x64xbf16>
    %cst = arith.constant dense<0.000000e+00> : vector<16x64xf32>
    %2 = tpu.matmul %0, %1, %cst {dimension_numbers = #tpu.dot_dimension_numbers<[1], [0], [0], [1], [0, 0, 1, 1], [], []>} : vector<16x128xbf16>, vector<128x64xbf16>, vector<16x64xf32> -> vector<16x64xf32>
    %c0_3 = arith.constant 0 : index
    %c0_4 = arith.constant 0 : index
    %3 = vector.load %arg3[%c0_3, %c0_4] : memref<1x64xf32, #tpu.memory_space<vmem>>, vector<1x64xf32>
    %4 = vector.broadcast %3 : vector<1x64xf32> to vector<16x64xf32>
    %5 = arith.addf %2, %4 : vector<16x64xf32>
    %cst_5 = arith.constant 0.000000e+00 : f32
    %6 = vector.broadcast %cst_5 : f32 to vector<16x64xf32>
    %7 = arith.maximumf %5, %6 : vector<16x64xf32>
    %8 = arith.truncf %7 : vector<16x64xf32> to vector<16x64xbf16>
    %c0_6 = arith.constant 0 : index
    %c0_7 = arith.constant 0 : index
    %9 = vector.load %arg4[%c0_6, %c0_7] : memref<64x32xbf16, #tpu.memory_space<vmem>>, vector<64x32xbf16>
    %cst_8 = arith.constant dense<0.000000e+00> : vector<16x32xf32>
    %10 = tpu.matmul %8, %9, %cst_8 {dimension_numbers = #tpu.dot_dimension_numbers<[1], [0], [0], [1], [0, 0, 1, 1], [], []>} : vector<16x64xbf16>, vector<64x32xbf16>, vector<16x32xf32> -> vector<16x32xf32>
    %c0_9 = arith.constant 0 : index
    %c0_10 = arith.constant 0 : index
    %11 = vector.load %arg5[%c0_9, %c0_10] : memref<1x32xf32, #tpu.memory_space<vmem>>, vector<1x32xf32>
    %12 = vector.broadcast %11 : vector<1x32xf32> to vector<16x32xf32>
    %13 = arith.addf %10, %12 : vector<16x32xf32>
    %cst_11 = arith.constant 0.000000e+00 : f32
    %14 = vector.broadcast %cst_11 : f32 to vector<16x32xf32>
    %15 = arith.maximumf %13, %14 : vector<16x32xf32>
    %16 = arith.truncf %15 : vector<16x32xf32> to vector<16x32xbf16>
    %c0_12 = arith.constant 0 : index
    %c0_13 = arith.constant 0 : index
    %17 = vector.load %arg6[%c0_12, %c0_13] : memref<32x8xbf16, #tpu.memory_space<vmem>>, vector<32x8xbf16>
    %cst_14 = arith.constant dense<0.000000e+00> : vector<16x8xf32>
    %18 = tpu.matmul %16, %17, %cst_14 {dimension_numbers = #tpu.dot_dimension_numbers<[1], [0], [0], [1], [0, 0, 1, 1], [], []>} : vector<16x32xbf16>, vector<32x8xbf16>, vector<16x8xf32> -> vector<16x8xf32>
    %c0_15 = arith.constant 0 : index
    %c0_16 = arith.constant 0 : index
    %19 = vector.load %arg7[%c0_15, %c0_16] : memref<1x8xf32, #tpu.memory_space<vmem>>, vector<1x8xf32>
    %20 = vector.broadcast %19 : vector<1x8xf32> to vector<16x8xf32>
    %21 = arith.addf %18, %20 : vector<16x8xf32>
    %c0_17 = arith.constant 0 : index
    %c0_18 = arith.constant 0 : index
    %22 = vector.load %arg8[%c0_17, %c0_18] : memref<16x8xf32, #tpu.memory_space<vmem>>, vector<16x8xf32>
    tpu.vector_store %arg8[%c0_17, %c0_18], %21 {strides = array<i32>} : memref<16x8xf32, #tpu.memory_space<vmem>>, vector<16x8xf32>,
    return
  }
  func.func @transform_0(%arg0: i32) -> (i32, i32) {
    %c0_i32 = arith.constant 0 : i32
    %c0_i32_0 = arith.constant 0 : i32
    return %arg0, %c0_i32 : i32, i32
  }
  func.func @transform_1(%arg0: i32) -> (i32, i32) {
    %c0_i32 = arith.constant 0 : i32
    %c0_i32_0 = arith.constant 0 : i32
    %c0_i32_1 = arith.constant 0 : i32
    return %c0_i32, %c0_i32_0 : i32, i32
  }
  func.func @transform_2(%arg0: i32) -> (i32, i32) {
    %c0_i32 = arith.constant 0 : i32
    %c0_i32_0 = arith.constant 0 : i32
    %c0_i32_1 = arith.constant 0 : i32
    return %c0_i32, %c0_i32_0 : i32, i32
  }
  func.func @transform_3(%arg0: i32) -> (i32, i32) {
    %c0_i32 = arith.constant 0 : i32
    %c0_i32_0 = arith.constant 0 : i32
    %c0_i32_1 = arith.constant 0 : i32
    return %c0_i32, %c0_i32_0 : i32, i32
  }
  func.func @transform_4(%arg0: i32) -> (i32, i32) {
    %c0_i32 = arith.constant 0 : i32
    %c0_i32_0 = arith.constant 0 : i32
    %c0_i32_1 = arith.constant 0 : i32
    return %c0_i32, %c0_i32_0 : i32, i32
  }
  func.func @transform_5(%arg0: i32) -> (i32, i32) {
    %c0_i32 = arith.constant 0 : i32
    %c0_i32_0 = arith.constant 0 : i32
    %c0_i32_1 = arith.constant 0 : i32
    return %c0_i32, %c0_i32_0 : i32, i32
  }
  func.func @transform_6(%arg0: i32) -> (i32, i32) {
    %c0_i32 = arith.constant 0 : i32
    %c0_i32_0 = arith.constant 0 : i32
    %c0_i32_1 = arith.constant 0 : i32
    return %c0_i32, %c0_i32_0 : i32, i32
  }
  func.func @transform_7(%arg0: i32) -> (i32, i32) {
    %c0_i32 = arith.constant 0 : i32
    %c0_i32_0 = arith.constant 0 : i32
    return %arg0, %c0_i32 : i32, i32
  }
}

</mosaic_0001>

<llo_original>
// kernel: tpu_custom_call.1
$region0: #{tpu_custom_call.1}
  #allocation0 [shape = 'u32[]', space=smem, size = 0x4, offset = 0x4, fixed_abs, tag = 'smem constant byte address 0x4 - core index']
  #allocation1 [shape = 'u32[72,128]{1,0:T(1,128)}', space=vmem, size = 0x9000, scoped, tag = 'internal scratch']
  %s0 = inlined_call_operand.vmem [shape: bf16[16,128], index: 0, kind: input, shape index: {}]
  %s1 = inlined_call_operand.vmem [shape: bf16[128,64], index: 1, kind: input, shape index: {}]
  %s2 = inlined_call_operand.vmem [shape: f32[1,64], index: 2, kind: input, shape index: {}]
  %s3 = inlined_call_operand.vmem [shape: bf16[64,32], index: 3, kind: input, shape index: {}]
  %s4 = inlined_call_operand.vmem [shape: f32[1,32], index: 4, kind: input, shape index: {}]
  %s5 = inlined_call_operand.vmem [shape: bf16[32,8], index: 5, kind: input, shape index: {}]
  %s6 = inlined_call_operand.vmem [shape: f32[1,8], index: 6, kind: input, shape index: {}]
  %s7 = inlined_call_operand.vmem [shape: f32[16,8], index: 7, kind: output, shape index: {}]
  %s8 = sld [smem:[#allocation0]]
  $region38: #{tpu_custom_call.1} parent=0
    _
  %s10 = ssub.s32 1, %s8
  %s11 = scalar_select 0, %s10, %s8
  // Predicated region
  $region2: #{tpu_custom_call.1} parent=0 // pred_check
    _
  $region3: #{tpu_custom_call.1} parent=0 // pred_check_branch
    %13 = sbr.rel (0) target = $region5
  $region4: #{tpu_custom_call.1} parent=0 // pred_region
    _
  $region5: #{tpu_custom_call.1} parent=0 // pred_fallthru
    _
  // Predicated region
  $region6: #{tpu_custom_call.1} parent=0 // pred_check
    _
  $region7: #{tpu_custom_call.1} parent=0 // pred_check_branch
    %15 = sbr.rel (0) target = $region9
  $region8: #{tpu_custom_call.1} parent=0 // pred_region
    _
  $region9: #{tpu_custom_call.1} parent=0 // pred_fallthru
    _
  // Predicated region
  $region10: #{tpu_custom_call.1} parent=0 // pred_check
    _
  $region11: #{tpu_custom_call.1} parent=0 // pred_check_branch
    %17 = sbr.rel (0) target = $region13
  $region12: #{tpu_custom_call.1} parent=0 // pred_region
    _
  $region13: #{tpu_custom_call.1} parent=0 // pred_fallthru
    _
  // Predicated region
  $region14: #{tpu_custom_call.1} parent=0 // pred_check
    _
  $region15: #{tpu_custom_call.1} parent=0 // pred_check_branch
    %19 = sbr.rel (0) target = $region17
  $region16: #{tpu_custom_call.1} parent=0 // pred_region
    _
  $region17: #{tpu_custom_call.1} parent=0 // pred_fallthru
    _
  // Predicated region
  $region18: #{tpu_custom_call.1} parent=0 // pred_check
    _
  $region19: #{tpu_custom_call.1} parent=0 // pred_check_branch
    %21 = sbr.rel (0) target = $region21
  $region20: #{tpu_custom_call.1} parent=0 // pred_region
    _
  $region21: #{tpu_custom_call.1} parent=0 // pred_fallthru
    _
  // Predicated region
  $region22: #{tpu_custom_call.1} parent=0 // pred_check
    _
  $region23: #{tpu_custom_call.1} parent=0 // pred_check_branch
    %23 = sbr.rel (0) target = $region25
  $region24: #{tpu_custom_call.1} parent=0 // pred_region
    _
  $region25: #{tpu_custom_call.1} parent=0 // pred_fallthru
    _
  // Predicated region
  $region26: #{tpu_custom_call.1} parent=0 // pred_check
    _
  $region27: #{tpu_custom_call.1} parent=0 // pred_check_branch
    %25 = sbr.rel (0) target = $region29
  $region28: #{tpu_custom_call.1} parent=0 // pred_region
    _
  $region29: #{tpu_custom_call.1} parent=0 // pred_fallthru
    _
  %v27 = vld [vmem:[%s0] sm:$0xf]
  %v28 = vld [vmem:[%s0 + $0x4] sm:$0xf]
  %v29 = vld [vmem:[%s1] sm:$0xf]
  %v30 = vld [vmem:[%s1 + $0x4] sm:$0xf]
  %v31 = vld [vmem:[%s1 + $0x8] sm:$0xf]
  %v32 = vld [vmem:[%s1 + $0xc] sm:$0xf]
  %v33 = vld [vmem:[%s1 + $0x10] sm:$0xf]
  %v34 = vld [vmem:[%s1 + $0x14] sm:$0xf]
  %v35 = vld [vmem:[%s1 + $0x18] sm:$0xf]
  %v36 = vld [vmem:[%s1 + $0x1c] sm:$0xf]
  %v37 = vld [vmem:[%s1 + $0x20] sm:$0xf]
  %v38 = vld [vmem:[%s1 + $0x24] sm:$0xf]
  %v39 = vld [vmem:[%s1 + $0x28] sm:$0xf]
  %v40 = vld [vmem:[%s1 + $0x2c] sm:$0xf]
  %v41 = vld [vmem:[%s1 + $0x30] sm:$0xf]
  %v42 = vld [vmem:[%s1 + $0x34] sm:$0xf]
  %v43 = vld [vmem:[%s1 + $0x38] sm:$0xf]
  %v44 = vld [vmem:[%s1 + $0x3c] sm:$0xf]
  %v45 = vld [vmem:[%s2] sm:$0x1]
  %v47 = vperm.slane %v45, 0
  %v51 = vunpack.c.l.b16 %v27
  %v52 = vunpack.c.l.b16 %v28
  %v53 = vpack.c.b16 %v52, %v51
  %v71 = vunpack.c.l.b16 %v29
  %v72 = vunpack.c.l.b16 %v30
  %v73 = vunpack.c.l.b16 %v31
  %v74 = vunpack.c.l.b16 %v32
  %v75 = vunpack.c.l.b16 %v33
  %v76 = vunpack.c.l.b16 %v34
  %v77 = vunpack.c.l.b16 %v35
  %v78 = vunpack.c.l.b16 %v36
  %v79 = vunpack.c.l.b16 %v37
  %v80 = vunpack.c.l.b16 %v38
  %v81 = vunpack.c.l.b16 %v39
  %v82 = vunpack.c.l.b16 %v40
  %v83 = vunpack.c.l.b16 %v41
  %v84 = vunpack.c.l.b16 %v42
  %v85 = vunpack.c.l.b16 %v43
  %v86 = vunpack.c.l.b16 %v44
  %v87 = vpack.c.b16 %v72, %v71
  %v88 = vpack.c.b16 %v74, %v73
  %v89 = vpack.c.b16 %v76, %v75
  %v90 = vpack.c.b16 %v78, %v77
  %v91 = vpack.c.b16 %v80, %v79
  %v92 = vpack.c.b16 %v82, %v81
  %v93 = vpack.c.b16 %v84, %v83
  %v94 = vpack.c.b16 %v86, %v85
  %103 = vmatpush.bf16.msra.mxu0 %v94
  %104 = vmatpush.bf16.msra.mxu0 %v93
  %105 = vmatpush.bf16.msra.mxu0 %v92
  %106 = vmatpush.bf16.msra.mxu0 %v91
  %107 = vmatpush.bf16.msra.mxu0 %v90
  %108 = vmatpush.bf16.msra.mxu0 %v89
  %109 = vmatpush.bf16.msra.mxu0 %v88
  %110 = vmatpush.bf16.msra.mxu0 %v87
  %111 = vmatmul.bf16.gmra.mxu0 %v53
  %v112 = vpop.f32.mrf.mxu0
  %v113 = vadd.f32 %v47, %v112
  %v114 = vpop.f32.mrf.mxu0
  %v115 = vadd.f32 %v47, %v114
  %116 = vdwg.mxu0
  %v117 = vmax.f32 %v113, 0.0
  %v118 = vmax.f32 %v115, 0.0
  %v119 = vpack.c.bf16 %v118, %v117
  %v120 = vld [vmem:[%s3] sm:$0xf]
  %v121 = vld [vmem:[%s3 + $0x4] sm:$0xf]
  %v122 = vld [vmem:[%s3 + $0x8] sm:$0xf]
  %v123 = vld [vmem:[%s3 + $0xc] sm:$0xf]
  %v124 = vld [vmem:[%s3 + $0x10] sm:$0xf]
  %v125 = vld [vmem:[%s3 + $0x14] sm:$0xf]
  %v126 = vld [vmem:[%s3 + $0x18] sm:$0xf]
  %v127 = vld [vmem:[%s3 + $0x1c] sm:$0xf]
  %v128 = vld [vmem:[%s4] sm:$0x1]
  %v130 = vperm.slane %v128, 0
  %v140 = vunpack.c.l.b16 %v120
  %v141 = vunpack.c.l.b16 %v121
  %v142 = vunpack.c.l.b16 %v122
  %v143 = vunpack.c.l.b16 %v123
  %v144 = vunpack.c.l.b16 %v124
  %v145 = vunpack.c.l.b16 %v125
  %v146 = vunpack.c.l.b16 %v126
  %v147 = vunpack.c.l.b16 %v127
  %v148 = vpack.c.b16 %v141, %v140
  %v149 = vpack.c.b16 %v143, %v142
  %v150 = vpack.c.b16 %v145, %v144
  %v151 = vpack.c.b16 %v147, %v146
  %vm156 = vcmask 523264
  %v158 = vsel %vm156, %v119, 0
  %160 = vmatpush.bf16.msra.mxu0 0
  %161 = vmatpush.bf16.msra.mxu0 0
  %162 = vmatpush.bf16.msra.mxu0 0
  %163 = vmatpush.bf16.msra.mxu0 0
  %164 = vmatpush.bf16.msra.mxu0 %v151
  %165 = vmatpush.bf16.msra.mxu0 %v150
  %166 = vmatpush.bf16.msra.mxu0 %v149
  %167 = vmatpush.bf16.msra.mxu0 %v148
  %168 = vmatmul.bf16.gmra.mxu0 %v158
  %v169 = vpop.f32.mrf.mxu0
  %v170 = vadd.f32 %v130, %v169
  %v171 = vpop.f32.mrf.mxu0
  %v172 = vadd.f32 %v130, %v171
  %173 = vdwg.mxu0
  %v174 = vmax.f32 %v170, 0.0
  %v175 = vmax.f32 %v172, 0.0
  %v176 = vpack.c.bf16 %v175, %v174
  %v177 = vld [vmem:[%s5] sm:$0xf]
  %v178 = vld [vmem:[%s5 + $0x4] sm:$0xf]
  %v179 = vld [vmem:[%s5 + $0x8] sm:$0xf]
  %v180 = vld [vmem:[%s5 + $0xc] sm:$0xf]
  %v181 = vld [vmem:[%s6] sm:$0x1]
  %v183 = vperm.slane %v181, 0
  %v189 = vunpack.c.l.b16 %v177
  %v190 = vunpack.c.l.b16 %v178
  %v191 = vunpack.c.l.b16 %v179
  %v192 = vunpack.c.l.b16 %v180
  %v193 = vpack.c.b16 %v190, %v189
  %v194 = vpack.c.b16 %v192, %v191
  %vm197 = vcmask 261120
  %v199 = vsel %vm197, %v176, 0
  %201 = vmatpush.bf16.msra.mxu0 0
  %202 = vmatpush.bf16.msra.mxu0 0
  %203 = vmatpush.bf16.msra.mxu0 0
  %204 = vmatpush.bf16.msra.mxu0 0
  %205 = vmatpush.bf16.msra.mxu0 0
  %206 = vmatpush.bf16.msra.mxu0 0
  %207 = vmatpush.bf16.msra.mxu0 %v194
  %208 = vmatpush.bf16.msra.mxu0 %v193
  %209 = vmatmul.bf16.gmra.mxu0 %v199
  %v210 = vpop.f32.mrf.mxu0
  %v211 = vadd.f32 %v183, %v210
  %v212 = vpop.f32.mrf.mxu0
  %v213 = vadd.f32 %v183, %v212
  %214 = vdwg.mxu0
  %vm215 = vcmask 64512
  %216 = vst.msk [vmem:[%s7] sm:$0xff] %vm215, %v211
  %217 = vst.msk [vmem:[%s7 + $0x8] sm:$0xff] %vm215, %v213
  // Predicated region
  $region30: #{tpu_custom_call.1} parent=0 // pred_check
    _
  $region31: #{tpu_custom_call.1} parent=0 // pred_check_branch
    %219 = sbr.rel (0) target = $region33
  $region32: #{tpu_custom_call.1} parent=0 // pred_region
    _
  $region33: #{tpu_custom_call.1} parent=0 // pred_fallthru
    _
  // Predicated region
  $region34: #{tpu_custom_call.1} parent=0 // pred_check
    _
  $region35: #{tpu_custom_call.1} parent=0 // pred_check_branch
    %221 = sbr.rel (0) target = $region37
  $region36: #{tpu_custom_call.1} parent=0 // pred_region
    _
  $region37: #{tpu_custom_call.1} parent=0 // pred_fallthru
    _

</llo_original>
